<compile_context>
chip_gen: v6e
topology: v6e:2x2x1
jax: 0.10.0
libtpu: 0.0.40
codegen_flags: <defaults>
</compile_context>

<pallas_src>
import functools

import jax
import jax.numpy as jnp
from jax.experimental import pallas as pl
from jax.experimental.pallas import tpu as pltpu


def _round_up(x, m):
    return ((x + m - 1) // m) * m


def _vmem_capacity_bytes():
    """Physical VMEM per TensorCore; conservative (v7x, 64 MiB) fallback."""
    try:
        info = pltpu.get_tpu_info()
        cap = getattr(info, "vmem_capacity_bytes", None)
        if cap:
            return int(cap)
    except Exception:
        pass
    return 64 * 1024 * 1024


def _kv_proj_kernel(ctx_ref, wk_ref, wv_ref, k_ref, v_ref):
    # Once per batch: K = ctx @ Wk, V = ctx @ Wv (shared across all heads).
    ctx = ctx_ref[0]                               # (M, D)
    k_ref[0] = jnp.dot(ctx, wk_ref[...],
                       preferred_element_type=jnp.float32).astype(k_ref.dtype)
    v_ref[0] = jnp.dot(ctx, wv_ref[...],
                       preferred_element_type=jnp.float32).astype(v_ref.dtype)


def _cross_attn_kernel(x_ref, g_ref, b_ref, wq_ref, k_ref, v_ref, wo_ref,
                       o_ref, qs_ref, oall_ref, *, heads, dim_head, eps):
    # One (batch, q-tile) per grid step; K/V arrive precomputed as (M, Dh).
    cdt = x_ref.dtype                              # native dtype fed to the MXU
    tq = x_ref.shape[1]

    x = x_ref[0]                                   # (tq, D)

    # LayerNorm over features (PyTorch semantics: biased variance), stats in f32.
    xf = x.astype(jnp.float32)
    mean = jnp.mean(xf, axis=-1, keepdims=True)
    var = jnp.mean((xf - mean) ** 2, axis=-1, keepdims=True)
    xn = (xf - mean) * jax.lax.rsqrt(var + eps)
    xn = xn * g_ref[...].astype(jnp.float32) + b_ref[...].astype(jnp.float32)
    xn = xn.astype(cdt)

    # Fused Q projection for all heads (attention scale already folded into Wq).
    q_all = jnp.dot(xn, wq_ref[...],
                    preferred_element_type=jnp.float32).astype(cdt)   # (tq, H*Dh)

    # Stack heads on the sublane axis: qs[h*tq + i, :] = q_all[i, h*Dh:(h+1)*Dh].
    for h in range(heads):
        qs_ref[h * tq:(h + 1) * tq, :] = q_all[:, h * dim_head:(h + 1) * dim_head]

    k = k_ref[0]                                   # (M, Dh)
    v = v_ref[0]                                   # (M, Dh)

    # One score matmul for all heads: contract on Dh directly (no k.T).
    sim = jax.lax.dot_general(
        qs_ref[...], k, dimension_numbers=(((1,), (1,)), ((), ())),
        preferred_element_type=jnp.float32)        # (H*tq, M)

    # Numerically stable, *unnormalized* softmax; normalization is deferred.
    sim = sim - jnp.max(sim, axis=-1, keepdims=True)
    p = jnp.exp(sim)                               # (H*tq, M) f32
    pv = jnp.dot(p.astype(cdt), v,
                 preferred_element_type=jnp.float32)            # (H*tq, Dh)
    inv = pl.reciprocal(jnp.sum(p, axis=-1, keepdims=True), approx=True)
    o_stack = (pv * inv).astype(cdt)               # deferred normalization

    # Un-stack heads back onto the lane axis: (tq, H*Dh).
    for h in range(heads):
        oall_ref[:, h * dim_head:(h + 1) * dim_head] = o_stack[h * tq:(h + 1) * tq, :]

    # Fused output projection across heads: one (tq, H*Dh) @ (H*Dh, D) matmul.
    out = jnp.dot(oall_ref[...], wo_ref[...], preferred_element_type=jnp.float32)
    o_ref[0] = out.astype(o_ref.dtype)


def _pick_tq(n, *, d, m, inner, heads, dim_head, x_itemsize, w_itemsize, budget):
    """Largest q-tile (dtype-aware sublane multiple, <=512) fitting the budget."""
    granule = max(8, 32 // x_itemsize)             # f32: 8, bf16: 16, int8: 32
    cap = min(512, _round_up(n, granule))
    for cand in range(cap, granule - 1, -granule):
        ht = heads * cand
        blocks = 2 * (2 * cand * d * x_itemsize            # x + out blocks (2x buffered)
                      + 2 * m * dim_head * x_itemsize      # k, v blocks
                      + 2 * d * inner * w_itemsize         # Wq, Wo
                      + 2 * d * 4)                         # gamma, beta
        scratch = (ht * dim_head + cand * inner) * x_itemsize
        inter = 4 * (cand * d + cand * inner               # xn, q_all (f32)
                     + 3 * ht * m                          # sim / shifted / exp (f32)
                     + ht * dim_head + cand * d)           # pv, out (f32)
        inter += ht * m * x_itemsize                       # p cast to compute dtype
        if blocks + scratch + int(1.2 * inter) <= budget:
            return cand
    return granule


def cross_attention(x, context, gamma, beta, wq, wkv, wo, *, heads, dim_head):
    B, N, D = x.shape
    _, M, _ = context.shape
    inner = heads * dim_head
    assert wq.shape == (D, inner)
    assert wkv.shape == (D, 2 * dim_head)
    assert wo.shape == (inner, D)

    # Host-side weight prep (zero in-kernel cost): fold the query scale into Wq
    # in f32 (then cast back), split Wkv so the kernels never lane-slice outputs.
    scale = dim_head ** (-0.5)
    wq_s = (wq.astype(jnp.float32) * scale).astype(wq.dtype)
    wk = wkv[:, :dim_head]
    wv = wkv[:, dim_head:]

    # Per-chip VMEM budget (v7x has 64 MiB/TC, v5e/v6e 128 MiB); leave headroom
    # for Mosaic internal scratch on top of the scoped limit.
    cap = _vmem_capacity_bytes()
    vmem_limit = min(int(0.75 * cap), 100 * 1024 * 1024)
    budget = int(0.8 * vmem_limit)

    # --- K/V projection, once per batch (MQA-shared across heads) -------------
    k, v = pl.pallas_call(
        _kv_proj_kernel,
        out_shape=(jax.ShapeDtypeStruct((B, M, dim_head), x.dtype),
                   jax.ShapeDtypeStruct((B, M, dim_head), x.dtype)),
        grid_spec=pltpu.PrefetchScalarGridSpec(
            num_scalar_prefetch=0,
            grid=(B,),
            in_specs=[
                pl.BlockSpec((1, M, D), lambda b: (b, 0, 0)),            # context
                pl.BlockSpec((D, dim_head), lambda b: (0, 0)),           # Wk
                pl.BlockSpec((D, dim_head), lambda b: (0, 0)),           # Wv
            ],
            out_specs=(pl.BlockSpec((1, M, dim_head), lambda b: (b, 0, 0)),
                       pl.BlockSpec((1, M, dim_head), lambda b: (b, 0, 0)))),
        compiler_params=pltpu.CompilerParams(
            dimension_semantics=("parallel",), vmem_limit_bytes=vmem_limit),
    )(context, wk, wv)

    # --- Main attention kernel -------------------------------------------------
    tq = _pick_tq(N, d=D, m=M, inner=inner, heads=heads, dim_head=dim_head,
                  x_itemsize=x.dtype.itemsize, w_itemsize=wq.dtype.itemsize,
                  budget=budget)
    n_pad = _round_up(N, tq)
    x_p = x if n_pad == N else jnp.pad(x, ((0, 0), (0, n_pad - N), (0, 0)))
    grid = (B, n_pad // tq)

    kernel = functools.partial(_cross_attn_kernel, heads=heads,
                               dim_head=dim_head, eps=1e-5)

    out = pl.pallas_call(
        kernel,
        out_shape=jax.ShapeDtypeStruct((B, n_pad, D), x.dtype),
        grid_spec=pltpu.PrefetchScalarGridSpec(
            num_scalar_prefetch=0,
            grid=grid,
            in_specs=[
                pl.BlockSpec((1, tq, D), lambda b, q: (b, q, 0)),            # x
                pl.BlockSpec((1, D), lambda b, q: (0, 0)),                   # ln gamma
                pl.BlockSpec((1, D), lambda b, q: (0, 0)),                   # ln beta
                pl.BlockSpec((D, inner), lambda b, q: (0, 0)),               # Wq (scaled)
                pl.BlockSpec((1, M, dim_head), lambda b, q: (b, 0, 0)),      # K
                pl.BlockSpec((1, M, dim_head), lambda b, q: (b, 0, 0)),      # V
                pl.BlockSpec((inner, D), lambda b, q: (0, 0)),               # Wo
            ],
            out_specs=pl.BlockSpec((1, tq, D), lambda b, q: (b, q, 0)),
            scratch_shapes=[
                pltpu.VMEM((heads * tq, dim_head), x.dtype),                 # head-stacked Q
                pltpu.VMEM((tq, inner), x.dtype),                            # head-merged O
            ],
        ),
        compiler_params=pltpu.CompilerParams(
            dimension_semantics=("parallel", "parallel"),
            vmem_limit_bytes=vmem_limit),
    )(x_p, gamma, beta, wq_s, k, v, wo)

    return out if n_pad == N else out[:, :N, :]


def cross_attention_ref(x, context, gamma, beta, wq, wkv, wo, *, heads, dim_head):
    """Pure-JAX reference mirroring the PyTorch forward."""
    scale = dim_head ** (-0.5)
    mean = jnp.mean(x, axis=-1, keepdims=True)
    var = jnp.mean((x - mean) ** 2, axis=-1, keepdims=True)
    xn = (x - mean) * jax.lax.rsqrt(var + 1e-5) * gamma[0] + beta[0]
    q = jnp.einsum('bnd,de->bne', xn, wq) * scale
    B, N, _ = q.shape
    q = q.reshape(B, N, heads, dim_head).transpose(0, 2, 1, 3)      # b h n d
    kv = jnp.einsum('bmd,de->bme', context, wkv)
    k, v = kv[..., :dim_head], kv[..., dim_head:]
    sim = jnp.einsum('bhid,bjd->bhij', q, k)
    attn = jax.nn.softmax(sim, axis=-1)
    out = jnp.einsum('bhij,bjd->bhid', attn, v)
    out = out.transpose(0, 2, 1, 3).reshape(B, N, heads * dim_head)
    return jnp.einsum('bne,ed->bnd', out, wo)


if __name__ == "__main__":
    # Small config consistent with the module: dim=32, heads=4, dim_head=16.
    B, N, M = 2, 8, 8
    dim, heads, dim_head = 32, 4, 16
    inner = heads * dim_head

    key = jax.random.PRNGKey(0)
    kx, kc, kg, kb, kq, kkv, ko = jax.random.split(key, 7)

    x = jax.random.normal(kx, (B, N, dim), dtype=jnp.float32)
    context = jax.random.normal(kc, (B, M, dim), dtype=jnp.float32)

    gamma = 1.0 + 0.1 * jax.random.normal(kg, (1, dim), dtype=jnp.float32)
    beta = 0.1 * jax.random.normal(kb, (1, dim), dtype=jnp.float32)
    wq = jax.random.normal(kq, (dim, inner), dtype=jnp.float32) / jnp.sqrt(dim)
    wkv = jax.random.normal(kkv, (dim, 2 * dim_head), dtype=jnp.float32) / jnp.sqrt(dim)
    wo = jax.random.normal(ko, (inner, dim), dtype=jnp.float32) / jnp.sqrt(inner)

    # TODO(synk): parallel_ff=True branch (SwiGLU FF) and norm_context=True not
    # implemented; module defaults are False for both.
    out = cross_attention(x, context, gamma, beta, wq, wkv, wo,
                          heads=heads, dim_head=dim_head)
    out = jax.block_until_ready(out)

    ref = cross_attention_ref(x, context, gamma, beta, wq, wkv, wo,
                              heads=heads, dim_head=dim_head)
    assert out.shape == (B, N, dim)
    # Tolerance relaxed vs. exact softmax because of pl.reciprocal(approx=True).
    assert jnp.allclose(out, ref, atol=5e-3, rtol=5e-3), "mismatch vs reference"

    print("KERNEL_OK")
</pallas_src>

<mosaic_0001>
module attributes {stable_mosaic.version = 11 : i64} {
  func.func @_kv_proj_kernel(%arg0: i32, %arg1: memref<1x8x32xf32, #tpu.memory_space<vmem>>, %arg2: memref<32x16xf32, #tpu.memory_space<vmem>>, %arg3: memref<32x16xf32, #tpu.memory_space<vmem>>, %arg4: memref<1x8x16xf32, #tpu.memory_space<vmem>>, %arg5: memref<1x8x16xf32, #tpu.memory_space<vmem>>) attributes {dimension_semantics = [#tpu.dimension_semantics<parallel>], iteration_bounds = array<i64: 2>, scalar_prefetch = 0 : i64, scratch_operands = 0 : i64, tpu.core_type = #tpu.core_type<tc>, window_params = [{transform_indices = @transform_0, window_bounds = array<i64: 1, 8, 32>}, {pipeline_mode = #tpu.pipeline_mode<synchronous>, transform_indices = @transform_1, window_bounds = array<i64: 32, 16>}, {pipeline_mode = #tpu.pipeline_mode<synchronous>, transform_indices = @transform_2, window_bounds = array<i64: 32, 16>}, {transform_indices = @transform_3, window_bounds = array<i64: 1, 8, 16>}, {transform_indices = @transform_4, window_bounds = array<i64: 1, 8, 16>}]} {
    %c0 = arith.constant 0 : index
    %c0_0 = arith.constant 0 : index
    %c0_1 = arith.constant 0 : index
    %0 = vector.load %arg1[%c0, %c0_0, %c0_1] : memref<1x8x32xf32, #tpu.memory_space<vmem>>, vector<1x8x32xf32>
    %1 = vector.shape_cast %0 : vector<1x8x32xf32> to vector<8x32xf32>
    %c0_2 = arith.constant 0 : index
    %c0_3 = arith.constant 0 : index
    %2 = vector.load %arg2[%c0_2, %c0_3] : memref<32x16xf32, #tpu.memory_space<vmem>>, vector<32x16xf32>
    %cst = arith.constant dense<0.000000e+00> : vector<8x16xf32>
    %3 = tpu.matmul %1, %2, %cst {dimension_numbers = #tpu.dot_dimension_numbers<[1], [0], [0], [1], [0, 0, 1, 1], [], []>} : vector<8x32xf32>, vector<32x16xf32>, vector<8x16xf32> -> vector<8x16xf32>
    %c0_4 = arith.constant 0 : index
    %c0_5 = arith.constant 0 : index
    %c0_6 = arith.constant 0 : index
    %4 = vector.load %arg4[%c0_4, %c0_5, %c0_6] : memref<1x8x16xf32, #tpu.memory_space<vmem>>, vector<1x8x16xf32>
    %5 = vector.shape_cast %4 : vector<1x8x16xf32> to vector<8x16xf32>
    %6 = vector.shape_cast %3 : vector<8x16xf32> to vector<1x8x16xf32>
    tpu.vector_store %arg4[%c0_4, %c0_5, %c0_6], %6 {strides = array<i32>} : memref<1x8x16xf32, #tpu.memory_space<vmem>>, vector<1x8x16xf32>,
    %c0_7 = arith.constant 0 : index
    %c0_8 = arith.constant 0 : index
    %7 = vector.load %arg3[%c0_7, %c0_8] : memref<32x16xf32, #tpu.memory_space<vmem>>, vector<32x16xf32>
    %cst_9 = arith.constant dense<0.000000e+00> : vector<8x16xf32>
    %8 = tpu.matmul %1, %7, %cst_9 {dimension_numbers = #tpu.dot_dimension_numbers<[1], [0], [0], [1], [0, 0, 1, 1], [], []>} : vector<8x32xf32>, vector<32x16xf32>, vector<8x16xf32> -> vector<8x16xf32>
    %c0_10 = arith.constant 0 : index
    %c0_11 = arith.constant 0 : index
    %c0_12 = arith.constant 0 : index
    %9 = vector.load %arg5[%c0_10, %c0_11, %c0_12] : memref<1x8x16xf32, #tpu.memory_space<vmem>>, vector<1x8x16xf32>
    %10 = vector.shape_cast %9 : vector<1x8x16xf32> to vector<8x16xf32>
    %11 = vector.shape_cast %8 : vector<8x16xf32> to vector<1x8x16xf32>
    tpu.vector_store %arg5[%c0_10, %c0_11, %c0_12], %11 {strides = array<i32>} : memref<1x8x16xf32, #tpu.memory_space<vmem>>, vector<1x8x16xf32>,
    return
  }
  func.func @transform_0(%arg0: i32) -> (i32, i32, i32) {
    %c0_i32 = arith.constant 0 : i32
    %c0_i32_0 = arith.constant 0 : i32
    %c0_i32_1 = arith.constant 0 : i32
    return %arg0, %c0_i32, %c0_i32_0 : i32, i32, i32
  }
  func.func @transform_1(%arg0: i32) -> (i32, i32) {
    %c0_i32 = arith.constant 0 : i32
    %c0_i32_0 = arith.constant 0 : i32
    %c0_i32_1 = arith.constant 0 : i32
    return %c0_i32, %c0_i32_0 : i32, i32
  }
  func.func @transform_2(%arg0: i32) -> (i32, i32) {
    %c0_i32 = arith.constant 0 : i32
    %c0_i32_0 = arith.constant 0 : i32
    %c0_i32_1 = arith.constant 0 : i32
    return %c0_i32, %c0_i32_0 : i32, i32
  }
  func.func @transform_3(%arg0: i32) -> (i32, i32, i32) {
    %c0_i32 = arith.constant 0 : i32
    %c0_i32_0 = arith.constant 0 : i32
    %c0_i32_1 = arith.constant 0 : i32
    return %arg0, %c0_i32, %c0_i32_0 : i32, i32, i32
  }
  func.func @transform_4(%arg0: i32) -> (i32, i32, i32) {
    %c0_i32 = arith.constant 0 : i32
    %c0_i32_0 = arith.constant 0 : i32
    %c0_i32_1 = arith.constant 0 : i32
    return %arg0, %c0_i32, %c0_i32_0 : i32, i32, i32
  }
}

</mosaic_0001>

<llo_original>
// kernel: tpu_custom_call.1
$region0: #{tpu_custom_call.1}
  #allocation0 [shape = 'u32[]', space=smem, size = 0x4, offset = 0x4, fixed_abs, tag = 'smem constant byte address 0x4 - core index']
  #allocation1 [shape = 'u32[144,128]{1,0:T(1,128)}', space=vmem, size = 0x12000, scoped, tag = 'internal scratch']
  %s0 = inlined_call_operand.vmem [shape: f32[2,8,32], index: 0, kind: input, shape index: {}]
  %s1 = inlined_call_operand.vmem [shape: f32[32,16], index: 1, kind: input, shape index: {}]
  %s2 = inlined_call_operand.vmem [shape: f32[32,16], index: 2, kind: input, shape index: {}]
  %s3 = inlined_call_operand.hbm [shape: f32[2,8,16], index: 3, kind: output, shape index: {0}]
  %s4 = inlined_call_operand.hbm [shape: f32[2,8,16], index: 4, kind: output, shape index: {1}]
  %5 = xla_tuple %s3, %s4
  %s6 = sld [smem:[#allocation0]]
  $region53: #{tpu_custom_call.1} parent=0
    _
  %s8 = ssub.s32 1, %s6
  %s9 = scalar_select 0, %s8, %s6
  $region1: #{tpu_custom_call.1} parent=0
    #allocation2 [shape = 'u8[8192]{0}', space=vmem, size = 0x2000, scoped, tag = 'output window, operand 0']
    #allocation3 [shape = 's32[2]{0}', space=sflag, size = 0x8, scoped, tag = 'scoped memory for tpu_custom_call.1']
    #allocation4 [shape = 'u8[8192]{0}', space=vmem, size = 0x2000, scoped, tag = 'output window, operand 1']
    #allocation5 [shape = 's32[2]{0}', space=sflag, size = 0x8, scoped, tag = 'scoped memory for tpu_custom_call.1']
    %10 = vsyncpa [#allocation3], 0
    %s11 = scalar_lea.sflag [#allocation3], 1
    %12 = vsyncpa %s11, 0
    %13 = vsyncpa [#allocation5], 0
    %s14 = scalar_lea.sflag [#allocation5], 1
    %15 = vsyncpa %s14, 0
    loop: start=0, step=1, limit=4
    $region2: #{tpu_custom_call.1} parent=1 // loop_pre_header
      _
    $region3: #{tpu_custom_call.1} parent=1 // loop_header
      %s17 = sphi 0, %s21
      %p18 = scmp.ge.s32.totalorder %s17, 4
      %s27 = sphi 0, %s29
      %s30 = sphi 0, %s27
      %s31 = sphi 0, %s30
      %s47 = sphi 0, %s31
      %s51 = sphi 0, %s51
      %s53 = sphi 0, %s51
      %s54 = sphi 0, %s53
      %s68 = sphi 0, %s54
      %s72 = sphi 0, %s72
      %s74 = sphi 0, %s72
      %s75 = sphi 0, %s74
      %s89 = sphi 0, %s75
      %s95 = sphi 0, %s97
      %s98 = sphi 0, %s95
      %s99 = sphi 0, %s98
      %s115 = sphi 0, %s99
      %s121 = sphi 0, %s123
      %s124 = sphi 0, %s121
      %s125 = sphi 0, %s124
      %s141 = sphi 0, %s125
    $region4: #{tpu_custom_call.1} parent=1 // loop_header_branch
      %20 = sbr.rel (%p18) target = $region8
    $region5: #{tpu_custom_call.1} parent=1 // loop_body
      %s22 = ssub.s32 %s17, 1
      %s23 = ssub.s32 %s17, 2
      %s24 = sadd.s32 %s17, 1
      %s25 = ssub.s32 %s17, %s24
      %p26 = scmp.eq.s32.totalorder %s25, 0
      %s28 = sadd.s32 %s27, 1
      %s29 = scalar_select %p26, %s27, %s28
      %p32 = pneg %p26
      %p33 = scmp.eq.s32.totalorder %s17, 1
      %p34 = por %p32, %p33
      %p35 = scmp.ne.s32.totalorder %s27, %s30
      %p36 = scmp.eq.s32.totalorder %s17, 0
      %p37 = por %p35, %p36
      %p38 = scmp.ne.s32.totalorder %s27, %s30
      %p39 = scmp.eq.s32.totalorder %s22, 1
      %p40 = por %p38, %p39
      %p41 = scmp.ne.s32.totalorder %s30, %s31
      %p42 = scmp.eq.s32.totalorder %s22, 0
      %p43 = por %p41, %p42
      %p44 = scmp.ne.s32.totalorder %s30, %s31
      %p45 = scmp.eq.s32.totalorder %s23, 1
      %p46 = por %p44, %p45
      %p48 = scmp.ne.s32.totalorder %s31, %s47
      %p49 = scmp.eq.s32.totalorder %s23, 0
      %p50 = por %p48, %p49
      %s52 = sadd.s32 %s51, 1
      %p55 = scmp.eq.s32.totalorder %s17, 1
      %p56 = scmp.ne.s32.totalorder %s51, %s53
      %p57 = scmp.eq.s32.totalorder %s17, 0
      %p58 = por %p56, %p57
      %p59 = scmp.ne.s32.totalorder %s51, %s53
      %p60 = scmp.eq.s32.totalorder %s22, 1
      %p61 = por %p59, %p60
      %p62 = scmp.ne.s32.totalorder %s53, %s54
      %p63 = scmp.eq.s32.totalorder %s22, 0
      %p64 = por %p62, %p63
      %p65 = scmp.ne.s32.totalorder %s53, %s54
      %p66 = scmp.eq.s32.totalorder %s23, 1
      %p67 = por %p65, %p66
      %p69 = scmp.ne.s32.totalorder %s54, %s68
      %p70 = scmp.eq.s32.totalorder %s23, 0
      %p71 = por %p69, %p70
      %s73 = sadd.s32 %s72, 1
      %p76 = scmp.eq.s32.totalorder %s17, 1
      %p77 = scmp.ne.s32.totalorder %s72, %s74
      %p78 = scmp.eq.s32.totalorder %s17, 0
      %p79 = por %p77, %p78
      %p80 = scmp.ne.s32.totalorder %s72, %s74
      %p81 = scmp.eq.s32.totalorder %s22, 1
      %p82 = por %p80, %p81
      %p83 = scmp.ne.s32.totalorder %s74, %s75
      %p84 = scmp.eq.s32.totalorder %s22, 0
      %p85 = por %p83, %p84
      %p86 = scmp.ne.s32.totalorder %s74, %s75
      %p87 = scmp.eq.s32.totalorder %s23, 1
      %p88 = por %p86, %p87
      %p90 = scmp.ne.s32.totalorder %s75, %s89
      %p91 = scmp.eq.s32.totalorder %s23, 0
      %p92 = por %p90, %p91
      %s93 = ssub.s32 %s17, %s24
      %p94 = scmp.eq.s32.totalorder %s93, 0
      %s96 = sadd.s32 %s95, 1
      %s97 = scalar_select %p94, %s95, %s96
      %p100 = pneg %p94
      %p101 = scmp.eq.s32.totalorder %s17, 1
      %p102 = por %p100, %p101
      %p103 = scmp.ne.s32.totalorder %s95, %s98
      %p104 = scmp.eq.s32.totalorder %s17, 0
      %p105 = por %p103, %p104
      %p106 = scmp.ne.s32.totalorder %s95, %s98
      %p107 = scmp.eq.s32.totalorder %s22, 1
      %p108 = por %p106, %p107
      %p109 = scmp.ne.s32.totalorder %s98, %s99
      %p110 = scmp.eq.s32.totalorder %s22, 0
      %p111 = por %p109, %p110
      %p112 = scmp.ne.s32.totalorder %s98, %s99
      %p113 = scmp.eq.s32.totalorder %s23, 1
      %p114 = por %p112, %p113
      %p116 = scmp.ne.s32.totalorder %s99, %s115
      %p117 = scmp.eq.s32.totalorder %s23, 0
      %p118 = por %p116, %p117
      %s119 = ssub.s32 %s17, %s24
      %p120 = scmp.eq.s32.totalorder %s119, 0
      %s122 = sadd.s32 %s121, 1
      %s123 = scalar_select %p120, %s121, %s122
      %p126 = pneg %p120
      %p127 = scmp.eq.s32.totalorder %s17, 1
      %p128 = por %p126, %p127
      %p129 = scmp.ne.s32.totalorder %s121, %s124
      %p130 = scmp.eq.s32.totalorder %s17, 0
      %p131 = por %p129, %p130
      %p132 = scmp.ne.s32.totalorder %s121, %s124
      %p133 = scmp.eq.s32.totalorder %s22, 1
      %p134 = por %p132, %p133
      %p135 = scmp.ne.s32.totalorder %s124, %s125
      %p136 = scmp.eq.s32.totalorder %s22, 0
      %p137 = por %p135, %p136
      %p138 = scmp.ne.s32.totalorder %s124, %s125
      %p139 = scmp.eq.s32.totalorder %s23, 1
      %p140 = por %p138, %p139
      %p142 = scmp.ne.s32.totalorder %s125, %s141
      %p143 = scmp.eq.s32.totalorder %s23, 0
      %p144 = por %p142, %p143
      %p145 = scmp.le.s32.totalorder 1, %s17
      %p146 = scmp.lt.s32.totalorder %s17, 3
      %p147 = pnand %p145, %p146
      %p148 = pneg %p147
      // Predicated region
      $region9: #{tpu_custom_call.1} parent=5 // pred_check
        _
      $region10: #{tpu_custom_call.1} parent=5 // pred_check_branch
        %150 = sbr.rel (%p147) target = $region12
      $region11: #{tpu_custom_call.1} parent=5 // pred_region
        %s151 = ssub.s32 %s17, 1
        // Predicated region
        $region13: #{tpu_custom_call.1} parent=11 // pred_check
          %p152 = pneg %p64
        $region14: #{tpu_custom_call.1} parent=11 // pred_check_branch
          %154 = sbr.rel (%p152) target = $region16
        $region15: #{tpu_custom_call.1} parent=11 // pred_region
          _
        $region16: #{tpu_custom_call.1} parent=11 // pred_fallthru
          _
        // Predicated region
        $region17: #{tpu_custom_call.1} parent=11 // pred_check
          %p155 = pneg %p85
        $region18: #{tpu_custom_call.1} parent=11 // pred_check_branch
          %157 = sbr.rel (%p155) target = $region20
        $region19: #{tpu_custom_call.1} parent=11 // pred_region
          _
        $region20: #{tpu_custom_call.1} parent=11 // pred_fallthru
          _
      $region12: #{tpu_custom_call.1} parent=5 // pred_fallthru
        _
      %p158 = scmp.lt.s32.totalorder %s17, 2
      // Predicated region
      $region21: #{tpu_custom_call.1} parent=5 // pred_check
        %p159 = pneg %p158
      $region22: #{tpu_custom_call.1} parent=5 // pred_check_branch
        %161 = sbr.rel (%p159) target = $region24
      $region23: #{tpu_custom_call.1} parent=5 // pred_region
        // Predicated region
        $region25: #{tpu_custom_call.1} parent=23 // pred_check
          %p162 = pneg %p37
        $region26: #{tpu_custom_call.1} parent=23 // pred_check_branch
          %164 = sbr.rel (%p162) target = $region28
        $region27: #{tpu_custom_call.1} parent=23 // pred_region
          %p165 = scmp.lt.s32.totalorder %s17, 1
          %s166 = scalar_select %p165, %s17, 1
          %s167 = smul.addr %s166, 8
          %s168 = scalar_lea.vmem %s0, %s167
        $region28: #{tpu_custom_call.1} parent=23 // pred_fallthru
          _
      $region24: #{tpu_custom_call.1} parent=5 // pred_fallthru
        _
      %p169 = scmp.le.s32.totalorder 1, %s17
      %p170 = scmp.lt.s32.totalorder %s17, 3
      %p171 = pnand %p169, %p170
      %p172 = pneg %p171
      // Predicated region
      $region29: #{tpu_custom_call.1} parent=5 // pred_check
        _
      $region30: #{tpu_custom_call.1} parent=5 // pred_check_branch
        %174 = sbr.rel (%p171) target = $region32
      $region31: #{tpu_custom_call.1} parent=5 // pred_region
        %s175 = ssub.s32 %s17, 1
        %p176 = scmp.lt.s32.totalorder %s22, 1
        %s177 = scalar_select %p176, %s22, 1
        %s178 = smul.addr %s177, 8
        %s179 = scalar_lea.vmem %s0, %s178
        %p180 = pneg %p43
        %p181 = pneg %p40
        %p182 = pneg %p64
        %p183 = pneg %p61
        %p184 = pneg %p85
        %p185 = pneg %p82
        %p186 = pneg %p111
        %p187 = pneg %p108
        %s188 = sand.u32 %s98, 1
        %s189 = scalar_lea.sflag [#allocation3], %s188
        %s190 = sand.u32 %s98, 1
        %s191 = smul.addr %s190, 8
        %s192 = scalar_lea.vmem [#allocation2], %s191
        %p193 = pneg %p137
        %p194 = pneg %p134
        %s195 = sand.u32 %s124, 1
        %s196 = scalar_lea.sflag [#allocation5], %s195
        %s197 = sand.u32 %s124, 1
        %s198 = smul.addr %s197, 8
        %s199 = scalar_lea.vmem [#allocation4], %s198
        %p200 = scmp.lt.s32.totalorder %s22, 1
        %s201 = scalar_select %p200, %s22, 1
        %s202 = smul.addr %s201, 8
        %s203 = scalar_lea.vmem %s0, %s202
        %v204 = vld [vmem:[%s203] sm:$0xff]
        %v205 = vld [vmem:[%s1] sm:$0xff]
        %v206 = vld [vmem:[%s1 + $0x8] sm:$0xff]
        %v207 = vld [vmem:[%s1 + $0x10] sm:$0xff]
        %v208 = vld [vmem:[%s1 + $0x18] sm:$0xff]
        %vm209 = vcmask 261120
        %v211 = vsel %vm209, %v204, 0
        %213 = vmatprep.subr.mxu0 0.0
        %214 = vmatpush1.msra.mxu0 0.0
        %215 = vmatprep.subr.mxu0 0.0
        %216 = vmatpush1.msra.mxu0 0.0
        %217 = vmatprep.subr.mxu0 0.0
        %218 = vmatpush1.msra.mxu0 0.0
        %219 = vmatprep.subr.mxu0 0.0
        %220 = vmatpush1.msra.mxu0 0.0
        %221 = vmatprep.subr.mxu0 0.0
        %222 = vmatpush1.msra.mxu0 0.0
        %223 = vmatprep.subr.mxu0 0.0
        %224 = vmatpush1.msra.mxu0 0.0
        %225 = vmatprep.subr.mxu0 0.0
        %226 = vmatpush1.msra.mxu0 0.0
        %227 = vmatprep.subr.mxu0 0.0
        %228 = vmatpush1.msra.mxu0 0.0
        %229 = vmatprep.subr.mxu0 0.0
        %230 = vmatpush1.msra.mxu0 0.0
        %231 = vmatprep.subr.mxu0 0.0
        %232 = vmatpush1.msra.mxu0 0.0
        %233 = vmatprep.subr.mxu0 0.0
        %234 = vmatpush1.msra.mxu0 0.0
        %235 = vmatprep.subr.mxu0 0.0
        %236 = vmatpush1.msra.mxu0 0.0
        %237 = vmatprep.subr.mxu0 0.0
        %238 = vmatpush1.msra.mxu0 %v208
        %239 = vmatprep.subr.mxu0 0.0
        %240 = vmatpush1.msra.mxu0 %v207
        %241 = vmatprep.subr.mxu0 0.0
        %242 = vmatpush1.msra.mxu0 %v206
        %243 = vmatprep.subr.mxu0 0.0
        %244 = vmatpush1.msra.mxu0 %v205
        %245 = vmatprep.subr.mxu0 0.0
        %246 = vmatpush2.msra.mxu0 0.0
        %247 = vmatprep.subr.mxu0 0.0
        %248 = vmatpush2.msra.mxu0 0.0
        %249 = vmatprep.subr.mxu0 0.0
        %250 = vmatpush2.msra.mxu0 0.0
        %251 = vmatprep.subr.mxu0 0.0
        %252 = vmatpush2.msra.mxu0 0.0
        %253 = vmatprep.subr.mxu0 0.0
        %254 = vmatpush2.msra.mxu0 0.0
        %255 = vmatprep.subr.mxu0 0.0
        %256 = vmatpush2.msra.mxu0 0.0
        %257 = vmatprep.subr.mxu0 0.0
        %258 = vmatpush2.msra.mxu0 0.0
        %259 = vmatprep.subr.mxu0 0.0
        %260 = vmatpush2.msra.mxu0 0.0
        %261 = vmatprep.subr.mxu0 0.0
        %262 = vmatpush2.msra.mxu0 0.0
        %263 = vmatprep.subr.mxu0 0.0
        %264 = vmatpush2.msra.mxu0 0.0
        %265 = vmatprep.subr.mxu0 0.0
        %266 = vmatpush2.msra.mxu0 0.0
        %267 = vmatprep.subr.mxu0 0.0
        %268 = vmatpush2.msra.mxu0 0.0
        %269 = vmatprep.subr.mxu0 0.0
        %270 = vmatpush2.msra.mxu0 0.0
        %271 = vmatprep.subr.mxu0 0.0
        %272 = vmatpush2.msra.mxu0 0.0
        %273 = vmatprep.subr.mxu0 0.0
        %274 = vmatpush2.msra.mxu0 0.0
        %275 = vmatprep.subr.mxu0 0.0
        %276 = vmatpush2.msra.mxu0 0.0
        %277 = vmatprep.mubr.f32.mxu0 0.0
        %278 = vmatmul.mubr.f32.gmra.mxu0 %v211
        %v279 = vpop.f32.mrf.mxu0
        %v280 = vadd.f32 0.0, %v279
        %v281 = vpop.f32.mrf.mxu0
        %282 = vdwg.mxu0
        %vm283 = vcmask 130048
        %284 = vst.msk [vmem:[%s192] sm:$0xff] %vm283, %v280
        %v285 = vld [vmem:[%s2] sm:$0xff]
        %v286 = vld [vmem:[%s2 + $0x8] sm:$0xff]
        %v287 = vld [vmem:[%s2 + $0x10] sm:$0xff]
        %v288 = vld [vmem:[%s2 + $0x18] sm:$0xff]
        %289 = vmatprep.subr.mxu0 0.0
        %290 = vmatpush1.msra.mxu0 0.0
        %291 = vmatprep.subr.mxu0 0.0
        %292 = vmatpush1.msra.mxu0 0.0
        %293 = vmatprep.subr.mxu0 0.0
        %294 = vmatpush1.msra.mxu0 0.0
        %295 = vmatprep.subr.mxu0 0.0
        %296 = vmatpush1.msra.mxu0 0.0
        %297 = vmatprep.subr.mxu0 0.0
        %298 = vmatpush1.msra.mxu0 0.0
        %299 = vmatprep.subr.mxu0 0.0
        %300 = vmatpush1.msra.mxu0 0.0
        %301 = vmatprep.subr.mxu0 0.0
        %302 = vmatpush1.msra.mxu0 0.0
        %303 = vmatprep.subr.mxu0 0.0
        %304 = vmatpush1.msra.mxu0 0.0
        %305 = vmatprep.subr.mxu0 0.0
        %306 = vmatpush1.msra.mxu0 0.0
        %307 = vmatprep.subr.mxu0 0.0
        %308 = vmatpush1.msra.mxu0 0.0
        %309 = vmatprep.subr.mxu0 0.0
        %310 = vmatpush1.msra.mxu0 0.0
        %311 = vmatprep.subr.mxu0 0.0
        %312 = vmatpush1.msra.mxu0 0.0
        %313 = vmatprep.subr.mxu0 0.0
        %314 = vmatpush1.msra.mxu0 %v288
        %315 = vmatprep.subr.mxu0 0.0
        %316 = vmatpush1.msra.mxu0 %v287
        %317 = vmatprep.subr.mxu0 0.0
        %318 = vmatpush1.msra.mxu0 %v286
        %319 = vmatprep.subr.mxu0 0.0
        %320 = vmatpush1.msra.mxu0 %v285
        %321 = vmatprep.subr.mxu0 0.0
        %322 = vmatpush2.msra.mxu0 0.0
        %323 = vmatprep.subr.mxu0 0.0
        %324 = vmatpush2.msra.mxu0 0.0
        %325 = vmatprep.subr.mxu0 0.0
        %326 = vmatpush2.msra.mxu0 0.0
        %327 = vmatprep.subr.mxu0 0.0
        %328 = vmatpush2.msra.mxu0 0.0
        %329 = vmatprep.subr.mxu0 0.0
        %330 = vmatpush2.msra.mxu0 0.0
        %331 = vmatprep.subr.mxu0 0.0
        %332 = vmatpush2.msra.mxu0 0.0
        %333 = vmatprep.subr.mxu0 0.0
        %334 = vmatpush2.msra.mxu0 0.0
        %335 = vmatprep.subr.mxu0 0.0
        %336 = vmatpush2.msra.mxu0 0.0
        %337 = vmatprep.subr.mxu0 0.0
        %338 = vmatpush2.msra.mxu0 0.0
        %339 = vmatprep.subr.mxu0 0.0
        %340 = vmatpush2.msra.mxu0 0.0
        %341 = vmatprep.subr.mxu0 0.0
        %342 = vmatpush2.msra.mxu0 0.0
        %343 = vmatprep.subr.mxu0 0.0
        %344 = vmatpush2.msra.mxu0 0.0
        %345 = vmatprep.subr.mxu0 0.0
        %346 = vmatpush2.msra.mxu0 0.0
        %347 = vmatprep.subr.mxu0 0.0
        %348 = vmatpush2.msra.mxu0 0.0
        %349 = vmatprep.subr.mxu0 0.0
        %350 = vmatpush2.msra.mxu0 0.0
        %351 = vmatprep.subr.mxu0 0.0
        %352 = vmatpush2.msra.mxu0 0.0
        %353 = vmatprep.mubr.f32.mxu0 0.0
        %354 = vmatmul.mubr.f32.gmra.mxu0 %v211
        %v355 = vpop.f32.mrf.mxu0
        %v356 = vadd.f32 0.0, %v355
        %v357 = vpop.f32.mrf.mxu0
        %358 = vdwg.mxu0
        %359 = vst.msk [vmem:[%s199] sm:$0xff] %vm283, %v356
        %s360 = sand.u32 %s98, 1
        %s361 = scalar_lea.sflag [#allocation3], %s360
        %s362 = sand.u32 %s98, 1
        %s363 = smul.addr %s362, 8
        %s364 = scalar_lea.vmem [#allocation2], %s363
        %s365 = sand.u32 %s124, 1
        %s366 = scalar_lea.sflag [#allocation5], %s365
        %s367 = sand.u32 %s124, 1
        %s368 = smul.addr %s367, 8
        %s369 = scalar_lea.vmem [#allocation4], %s368
        // Predicated region
        $region33: #{tpu_custom_call.1} parent=31 // pred_check
          %p370 = pneg %p108
        $region34: #{tpu_custom_call.1} parent=31 // pred_check_branch
          %372 = sbr.rel (%p370) target = $region36
        $region35: #{tpu_custom_call.1} parent=31 // pred_region
          %s374 = ssub.s32 128, 128
          %375 = vsyncadd %s361, %s374
          %s376 = smul.addr %s22, 128
          %s377 = scalar_lea.hbm %s3, %s376
          %s379 = sshll.u32 %s364, 4
          %s380 = int_to_ptr.vmem [resolvable:$true] %s379
          %382 = dma.vmem_to_hbm [thread:$0]  %s380, 128, %s377, %s361
        $region36: #{tpu_custom_call.1} parent=31 // pred_fallthru
          _
        // Predicated region
        $region37: #{tpu_custom_call.1} parent=31 // pred_check
          %p383 = pneg %p134
        $region38: #{tpu_custom_call.1} parent=31 // pred_check_branch
          %385 = sbr.rel (%p383) target = $region40
        $region39: #{tpu_custom_call.1} parent=31 // pred_region
          %s387 = ssub.s32 128, 128
          %388 = vsyncadd %s366, %s387
          %s389 = smul.addr %s22, 128
          %s390 = scalar_lea.hbm %s4, %s389
          %s392 = sshll.u32 %s369, 4
          %s393 = int_to_ptr.vmem [resolvable:$true] %s392
          %395 = dma.vmem_to_hbm [thread:$0]  %s393, 128, %s390, %s366
        $region40: #{tpu_custom_call.1} parent=31 // pred_fallthru
          _
      $region32: #{tpu_custom_call.1} parent=5 // pred_fallthru
        _
      %p396 = scmp.le.s32.totalorder 2, %s17
      // Predicated region
      $region41: #{tpu_custom_call.1} parent=5 // pred_check
        %p397 = pneg %p396
      $region42: #{tpu_custom_call.1} parent=5 // pred_check_branch
        %399 = sbr.rel (%p397) target = $region44
      $region43: #{tpu_custom_call.1} parent=5 // pred_region
        %s400 = ssub.s32 %s17, 2
        // Predicated region
        $region45: #{tpu_custom_call.1} parent=43 // pred_check
          %p401 = pneg %p114
        $region46: #{tpu_custom_call.1} parent=43 // pred_check_branch
          %403 = sbr.rel (%p401) target = $region48
        $region47: #{tpu_custom_call.1} parent=43 // pred_region
          %s404 = sand.u32 %s99, 1
          %s405 = scalar_lea.sflag [#allocation3], %s404
          %s406 = sand.u32 %s99, 1
          %s407 = smul.addr %s406, 8
          %s408 = scalar_lea.vmem [#allocation2], %s407
          %409 = dma.done %s405, 128
        $region48: #{tpu_custom_call.1} parent=43 // pred_fallthru
          _
        // Predicated region
        $region49: #{tpu_custom_call.1} parent=43 // pred_check
          %p410 = pneg %p140
        $region50: #{tpu_custom_call.1} parent=43 // pred_check_branch
          %412 = sbr.rel (%p410) target = $region52
        $region51: #{tpu_custom_call.1} parent=43 // pred_region
          %s413 = sand.u32 %s125, 1
          %s414 = scalar_lea.sflag [#allocation5], %s413
          %s415 = sand.u32 %s125, 1
          %s416 = smul.addr %s415, 8
          %s417 = scalar_lea.vmem [#allocation4], %s416
          %418 = dma.done %s414, 128
        $region52: #{tpu_custom_call.1} parent=43 // pred_fallthru
          _
      $region44: #{tpu_custom_call.1} parent=5 // pred_fallthru
        _
    $region6: #{tpu_custom_call.1} parent=1 // loop_footer
      %s21 = sadd.s32 1, %s17
    $region7: #{tpu_custom_call.1} parent=1 // loop_footer_branch
      %16 = sbr.rel target = $region3
    $region8: #{tpu_custom_call.1} parent=1 // loop_exit
      _
    %419 = vsyncpa [#allocation3], 1
    %s420 = scalar_lea.sflag [#allocation3], 1
    %421 = vsyncpa %s420, 1
    %422 = vsyncpa [#allocation5], 1
    %s423 = scalar_lea.sflag [#allocation5], 1
    %424 = vsyncpa %s423, 1

</llo_original>
